<compile_context>
chip_gen: v7x
topology: tpu7x:2x2x1
jax: 0.10.0
libtpu: 0.0.40
codegen_flags: <defaults>
</compile_context>

<pallas_src>
import functools

import jax
import jax.numpy as jnp
from jax.experimental import pallas as pl
from jax.experimental.pallas import tpu as pltpu

_LANE = 128
_SUBLANE = 8


def _round_up(n, m):
    return ((n + m - 1) // m) * m


def _vmem_capacity_bytes():
    """Physical VMEM per TensorCore (v5e/v6e: 128 MiB, v7x: 64 MiB)."""
    try:
        return int(pltpu.get_tpu_info().vmem_capacity_bytes)
    except Exception:
        return 64 << 20  # conservative default (v7x per-TC VMEM)


def _make_dan_kernel(hid_layer: int):
    """Kernel for `hid_layer` Linear+ReLU blocks followed by the classifier."""

    def kernel(pooled_ref, *refs):
        # refs = (W0, b0, W1, b1, ..., W_cls, b_cls, out_ref)
        out_ref = refs[-1]
        params = refs[:-1]

        h = pooled_ref[...]                          # (TB, E_pad) bf16 MXU operand
        for i in range(hid_layer + 1):
            w = params[2 * i][...]                   # bf16 (in_pad, out_pad)
            b = params[2 * i + 1][...]               # f32  (1, out_pad)
            # bf16 MXU operands, f32 accumulation; bias-add / ReLU in f32
            # (v5e has no bf16 VPU path).
            acc = jnp.dot(h, w, preferred_element_type=jnp.float32) + b
            if i < hid_layer:
                # ReLU; Dropout(hid_drop) -> identity in eval mode.
                h = jnp.maximum(acc, 0.0).astype(jnp.bfloat16)
            else:
                out_ref[...] = acc.astype(out_ref.dtype)

    return kernel


@functools.partial(jax.jit, static_argnames=("hid_layer", "tag_size"))
def dan_forward(x, emb_table, params_flat, *, hid_layer, tag_size):
    """DanModel.forward (eval mode).

    x:           int32 [B, S] token ids
    emb_table:   [V, E] embedding matrix (pass bf16 to halve gather traffic)
    params_flat: tuple (W0, b0, ..., W_{L-1}, b_{L-1}, W_cls, b_cls),
                 biases shaped (1, dim).
    returns:     float32 [B, tag_size] scores
    """
    # --- JAX glue: embedding gather + mean over seq (== avg_pool2d((S,1))). ---
    # Gather in the table's storage dtype (bf16 recommended); accumulate the
    # mean in f32.  Dropout(emb_drop) -> identity in eval mode.
    pooled = jnp.mean(jnp.take(emb_table, x, axis=0).astype(jnp.float32), axis=1)

    B, E = pooled.shape
    H = params_flat[0].shape[1]

    # Lane-dense padded dims (multiples of 128).
    E_pad = _round_up(E, _LANE)
    H_pad = _round_up(H, _LANE)
    T_pad = _round_up(tag_size, _LANE)

    # --- pad params: weights -> bf16 (MXU operands), biases stay f32. --------
    padded, param_specs = [], []
    in_pad = E_pad
    for li in range(hid_layer + 1):
        w = params_flat[2 * li]
        b = params_flat[2 * li + 1]
        out_pad = H_pad if li < hid_layer else T_pad
        w_p = jnp.pad(w, ((0, in_pad - w.shape[0]), (0, out_pad - w.shape[1])))
        b_p = jnp.pad(b, ((0, 0), (0, out_pad - b.shape[1])))
        padded += [w_p.astype(jnp.bfloat16), b_p.astype(jnp.float32)]
        # Constant index_map + single-buffering: params are DMA'd once and stay
        # resident across the whole batch grid (no double-buffered 2x copy).
        param_specs += [
            pl.BlockSpec((in_pad, out_pad), lambda i: (0, 0),
                         pipeline_mode=pl.Buffered(1)),
            pl.BlockSpec((1, out_pad), lambda i: (0, 0),
                         pipeline_mode=pl.Buffered(1)),
        ]
        in_pad = out_pad

    param_bytes = sum(p.size * p.dtype.itemsize for p in padded)

    # --- batch tile: guarantee >= 2 grid steps so the "parallel" axis really
    #     splits across v7x's two TensorCores; large batches use 512-row tiles.
    if B >= 1024:
        TB = 512
    else:
        TB = min(512, max(_SUBLANE, _round_up(-(-B // 2), _SUBLANE)))

    # --- generation-aware VMEM budget ----------------------------------------
    act_pad = max(E_pad, H_pad, T_pad)

    def footprint(tb):
        return (2 * tb * E_pad * 2          # double-buffered bf16 input tiles
                + 2 * tb * T_pad * 2        # double-buffered bf16 output tiles
                + param_bytes               # single-buffered resident params
                + 3 * tb * act_pad * 4)     # f32 activation scratch / spills

    # ~100 MiB cap on 128 MiB parts (v5e/v6e), ~52 MiB on v7x's 64 MiB.
    vmem_cap = min(_vmem_capacity_bytes() - (12 << 20), 100 << 20)
    # Prefer shrinking the batch tile over blowing the per-generation cap.
    while TB > 128 and footprint(TB) + (4 << 20) > vmem_cap:
        TB = max(_round_up(TB // 2, _SUBLANE), _SUBLANE)

    bytes_needed = footprint(TB)
    # Never clamp below the real footprint (avoid Mosaic VMEM compile failure).
    vmem_limit = max(min(bytes_needed + (4 << 20), vmem_cap),
                     bytes_needed, 8 << 20)

    B_pad = max(_round_up(B, TB), 2 * TB)
    pooled_p = jnp.pad(pooled, ((0, B_pad - B), (0, E_pad - E))).astype(jnp.bfloat16)

    in_specs = [pl.BlockSpec((TB, E_pad), lambda i: (i, 0))] + param_specs

    out_p = pl.pallas_call(
        _make_dan_kernel(hid_layer),
        out_shape=jax.ShapeDtypeStruct((B_pad, T_pad), jnp.bfloat16),
        grid_spec=pltpu.PrefetchScalarGridSpec(
            num_scalar_prefetch=0,
            grid=(B_pad // TB,),
            in_specs=in_specs,
            out_specs=pl.BlockSpec((TB, T_pad), lambda i: (i, 0)),
        ),
        compiler_params=pltpu.CompilerParams(
            dimension_semantics=("parallel",),   # batch split across TCs (v7x)
            vmem_limit_bytes=int(vmem_limit),
        ),
    )(pooled_p, *padded)

    # Slice off batch/tag padding; return scores in f32.
    return out_p[:B, :tag_size].astype(jnp.float32)


def init_params(key, vocab_size, emb_size, hid_size, hid_layer, tag_size, v=0.08):
    """Deterministic uniform(-v, v) init, mirroring init_model_parameters."""
    keys = jax.random.split(key, 2 * hid_layer + 3)
    ki = iter(keys)

    emb_table = jax.random.uniform(
        next(ki), (vocab_size, emb_size), jnp.float32, -v, v)

    params = []
    for i in range(hid_layer):
        in_dim = emb_size if i == 0 else hid_size
        w = jax.random.uniform(next(ki), (in_dim, hid_size), jnp.float32, -v, v)
        b = jax.random.uniform(next(ki), (1, hid_size), jnp.float32, -v, v)
        params += [w, b]

    w_cls = jax.random.uniform(next(ki), (hid_size, tag_size), jnp.float32, -v, v)
    b_cls = jax.random.uniform(next(ki), (1, tag_size), jnp.float32, -v, v)
    params += [w_cls, b_cls]

    return emb_table, tuple(params)


def reference_forward(x, emb_table, params_flat, hid_layer):
    """Pure-JAX f32 reference of DanModel.forward (eval mode)."""
    embedded = jnp.take(emb_table, x, axis=0)
    h = jnp.mean(embedded, axis=1)
    for i in range(hid_layer):
        h = jnp.maximum(h @ params_flat[2 * i] + params_flat[2 * i + 1][0], 0.0)
    return h @ params_flat[-2] + params_flat[-1][0]


if __name__ == "__main__":
    # Small config consistent with the module:
    #   emb_size=32, hid_size=32, hid_layer=2, len(vocab)=50, tag_size=8;
    #   token-id sequences of length 8, batch 2.
    VOCAB, EMB, HID, LAYERS, TAGS = 50, 32, 32, 2, 8
    B, S = 2, 8

    key = jax.random.PRNGKey(0)
    k_params, k_x = jax.random.split(key)

    emb_table, params = init_params(k_params, VOCAB, EMB, HID, LAYERS, TAGS)
    x = jax.random.randint(k_x, (B, S), 0, VOCAB, dtype=jnp.int32)

    # Store the embedding table in bf16: the B*S*E gather dominates HBM traffic
    # at realistic sizes; the mean is still accumulated in f32 inside the jit.
    emb_bf16 = emb_table.astype(jnp.bfloat16)

    scores = dan_forward(x, emb_bf16, params, hid_layer=LAYERS, tag_size=TAGS)
    scores = jax.block_until_ready(scores)

    ref = reference_forward(x, emb_table, params, LAYERS)
    assert scores.shape == (B, TAGS), scores.shape
    # bf16 gather / bf16 MXU operands / bf16 writeback (f32 accumulation)
    # -> tolerance looser than pure f32.
    assert jnp.allclose(scores, ref, atol=1e-2, rtol=2e-2), (scores, ref)

    print("KERNEL_OK")
</pallas_src>

<mosaic_0001>
module attributes {stable_mosaic.version = 11 : i64} {
  func.func @kernel(%arg0: i32, %arg1: memref<8x128xbf16, #tpu.memory_space<vmem>>, %arg2: memref<128x128xbf16, #tpu.memory_space<vmem>>, %arg3: memref<1x128xf32, #tpu.memory_space<vmem>>, %arg4: memref<128x128xbf16, #tpu.memory_space<vmem>>, %arg5: memref<1x128xf32, #tpu.memory_space<vmem>>, %arg6: memref<128x128xbf16, #tpu.memory_space<vmem>>, %arg7: memref<1x128xf32, #tpu.memory_space<vmem>>, %arg8: memref<8x128xbf16, #tpu.memory_space<vmem>>) attributes {dimension_semantics = [#tpu.dimension_semantics<parallel>], iteration_bounds = array<i64: 2>, scalar_prefetch = 0 : i64, scratch_operands = 0 : i64, tpu.core_type = #tpu.core_type<tc>, window_params = [{transform_indices = @transform_0, window_bounds = array<i64: 8, 128>}, {pipeline_mode = #tpu.pipeline_mode<synchronous>, transform_indices = @transform_1, window_bounds = array<i64: 128, 128>}, {pipeline_mode = #tpu.pipeline_mode<synchronous>, transform_indices = @transform_2, window_bounds = array<i64: 1, 128>}, {pipeline_mode = #tpu.pipeline_mode<synchronous>, transform_indices = @transform_3, window_bounds = array<i64: 128, 128>}, {pipeline_mode = #tpu.pipeline_mode<synchronous>, transform_indices = @transform_4, window_bounds = array<i64: 1, 128>}, {pipeline_mode = #tpu.pipeline_mode<synchronous>, transform_indices = @transform_5, window_bounds = array<i64: 128, 128>}, {pipeline_mode = #tpu.pipeline_mode<synchronous>, transform_indices = @transform_6, window_bounds = array<i64: 1, 128>}, {transform_indices = @transform_7, window_bounds = array<i64: 8, 128>}]} {
    %c0 = arith.constant 0 : index
    %c0_0 = arith.constant 0 : index
    %0 = vector.load %arg1[%c0, %c0_0] : memref<8x128xbf16, #tpu.memory_space<vmem>>, vector<8x128xbf16>
    %c0_1 = arith.constant 0 : index
    %c0_2 = arith.constant 0 : index
    %1 = vector.load %arg2[%c0_1, %c0_2] : memref<128x128xbf16, #tpu.memory_space<vmem>>, vector<128x128xbf16>
    %c0_3 = arith.constant 0 : index
    %c0_4 = arith.constant 0 : index
    %2 = vector.load %arg3[%c0_3, %c0_4] : memref<1x128xf32, #tpu.memory_space<vmem>>, vector<1x128xf32>
    %cst = arith.constant dense<0.000000e+00> : vector<8x128xf32>
    %3 = tpu.matmul %0, %1, %cst {dimension_numbers = #tpu.dot_dimension_numbers<[1], [0], [0], [1], [0, 0, 1, 1], [], []>} : vector<8x128xbf16>, vector<128x128xbf16>, vector<8x128xf32> -> vector<8x128xf32>
    %4 = vector.broadcast %2 : vector<1x128xf32> to vector<8x128xf32>
    %5 = arith.addf %3, %4 : vector<8x128xf32>
    %cst_5 = arith.constant 0.000000e+00 : f32
    %6 = vector.broadcast %cst_5 : f32 to vector<8x128xf32>
    %7 = arith.maximumf %5, %6 : vector<8x128xf32>
    %8 = arith.truncf %7 : vector<8x128xf32> to vector<8x128xbf16>
    %c0_6 = arith.constant 0 : index
    %c0_7 = arith.constant 0 : index
    %9 = vector.load %arg4[%c0_6, %c0_7] : memref<128x128xbf16, #tpu.memory_space<vmem>>, vector<128x128xbf16>
    %c0_8 = arith.constant 0 : index
    %c0_9 = arith.constant 0 : index
    %10 = vector.load %arg5[%c0_8, %c0_9] : memref<1x128xf32, #tpu.memory_space<vmem>>, vector<1x128xf32>
    %cst_10 = arith.constant dense<0.000000e+00> : vector<8x128xf32>
    %11 = tpu.matmul %8, %9, %cst_10 {dimension_numbers = #tpu.dot_dimension_numbers<[1], [0], [0], [1], [0, 0, 1, 1], [], []>} : vector<8x128xbf16>, vector<128x128xbf16>, vector<8x128xf32> -> vector<8x128xf32>
    %12 = vector.broadcast %10 : vector<1x128xf32> to vector<8x128xf32>
    %13 = arith.addf %11, %12 : vector<8x128xf32>
    %cst_11 = arith.constant 0.000000e+00 : f32
    %14 = vector.broadcast %cst_11 : f32 to vector<8x128xf32>
    %15 = arith.maximumf %13, %14 : vector<8x128xf32>
    %16 = arith.truncf %15 : vector<8x128xf32> to vector<8x128xbf16>
    %c0_12 = arith.constant 0 : index
    %c0_13 = arith.constant 0 : index
    %17 = vector.load %arg6[%c0_12, %c0_13] : memref<128x128xbf16, #tpu.memory_space<vmem>>, vector<128x128xbf16>
    %c0_14 = arith.constant 0 : index
    %c0_15 = arith.constant 0 : index
    %18 = vector.load %arg7[%c0_14, %c0_15] : memref<1x128xf32, #tpu.memory_space<vmem>>, vector<1x128xf32>
    %cst_16 = arith.constant dense<0.000000e+00> : vector<8x128xf32>
    %19 = tpu.matmul %16, %17, %cst_16 {dimension_numbers = #tpu.dot_dimension_numbers<[1], [0], [0], [1], [0, 0, 1, 1], [], []>} : vector<8x128xbf16>, vector<128x128xbf16>, vector<8x128xf32> -> vector<8x128xf32>
    %20 = vector.broadcast %18 : vector<1x128xf32> to vector<8x128xf32>
    %21 = arith.addf %19, %20 : vector<8x128xf32>
    %22 = arith.truncf %21 : vector<8x128xf32> to vector<8x128xbf16>
    %c0_17 = arith.constant 0 : index
    %c0_18 = arith.constant 0 : index
    %23 = vector.load %arg8[%c0_17, %c0_18] : memref<8x128xbf16, #tpu.memory_space<vmem>>, vector<8x128xbf16>
    tpu.vector_store %arg8[%c0_17, %c0_18], %22 {strides = array<i32>} : memref<8x128xbf16, #tpu.memory_space<vmem>>, vector<8x128xbf16>,
    return
  }
  func.func @transform_0(%arg0: i32) -> (i32, i32) {
    %c0_i32 = arith.constant 0 : i32
    %c0_i32_0 = arith.constant 0 : i32
    return %arg0, %c0_i32 : i32, i32
  }
  func.func @transform_1(%arg0: i32) -> (i32, i32) {
    %c0_i32 = arith.constant 0 : i32
    %c0_i32_0 = arith.constant 0 : i32
    %c0_i32_1 = arith.constant 0 : i32
    return %c0_i32, %c0_i32_0 : i32, i32
  }
  func.func @transform_2(%arg0: i32) -> (i32, i32) {
    %c0_i32 = arith.constant 0 : i32
    %c0_i32_0 = arith.constant 0 : i32
    %c0_i32_1 = arith.constant 0 : i32
    return %c0_i32, %c0_i32_0 : i32, i32
  }
  func.func @transform_3(%arg0: i32) -> (i32, i32) {
    %c0_i32 = arith.constant 0 : i32
    %c0_i32_0 = arith.constant 0 : i32
    %c0_i32_1 = arith.constant 0 : i32
    return %c0_i32, %c0_i32_0 : i32, i32
  }
  func.func @transform_4(%arg0: i32) -> (i32, i32) {
    %c0_i32 = arith.constant 0 : i32
    %c0_i32_0 = arith.constant 0 : i32
    %c0_i32_1 = arith.constant 0 : i32
    return %c0_i32, %c0_i32_0 : i32, i32
  }
  func.func @transform_5(%arg0: i32) -> (i32, i32) {
    %c0_i32 = arith.constant 0 : i32
    %c0_i32_0 = arith.constant 0 : i32
    %c0_i32_1 = arith.constant 0 : i32
    return %c0_i32, %c0_i32_0 : i32, i32
  }
  func.func @transform_6(%arg0: i32) -> (i32, i32) {
    %c0_i32 = arith.constant 0 : i32
    %c0_i32_0 = arith.constant 0 : i32
    %c0_i32_1 = arith.constant 0 : i32
    return %c0_i32, %c0_i32_0 : i32, i32
  }
  func.func @transform_7(%arg0: i32) -> (i32, i32) {
    %c0_i32 = arith.constant 0 : i32
    %c0_i32_0 = arith.constant 0 : i32
    return %arg0, %c0_i32 : i32, i32
  }
}

</mosaic_0001>

<llo_original>
// kernel: dan_forward.1
$region0: #{dan_forward.1}
  #allocation0 [shape = 'u32[]', space=smem, size = 0x4, offset = 0x4, fixed_abs, tag = 'smem constant byte address 0x4 - core index']
  #allocation1 [shape = 'u32[144,128]{1,0:T(1,128)}', space=vmem, size = 0x12000, scoped, tag = 'internal scratch']
  %s0 = inlined_call_operand.vmem [shape: bf16[16,128], index: 0, kind: input, shape index: {}]
  %s1 = inlined_call_operand.vmem [shape: bf16[128,128], index: 1, kind: input, shape index: {}]
  %s2 = inlined_call_operand.vmem [shape: f32[1,128], index: 2, kind: input, shape index: {}]
  %s3 = inlined_call_operand.vmem [shape: bf16[128,128], index: 3, kind: input, shape index: {}]
  %s4 = inlined_call_operand.vmem [shape: f32[1,128], index: 4, kind: input, shape index: {}]
  %s5 = inlined_call_operand.vmem [shape: bf16[128,128], index: 5, kind: input, shape index: {}]
  %s6 = inlined_call_operand.vmem [shape: f32[1,128], index: 6, kind: input, shape index: {}]
  %s7 = inlined_call_operand.vmem [shape: bf16[16,128], index: 7, kind: output, shape index: {}]
  %s8 = sld [smem:[#allocation0]]
  $region61: #{dan_forward.1} parent=0
    _
  %s10 = ssub.s32 1, %s8
  %s11 = scalar_select 0, %s10, %s8
  loop: start=0, step=1, limit=4
  $region2: #{dan_forward.1} parent=0 // loop_pre_header
    _
  $region3: #{dan_forward.1} parent=0 // loop_header
    %s13 = sphi 0, %s17
    %p14 = scmp.ge.s32.totalorder %s13, 4
    %s23 = sphi 0, %s25
    %s26 = sphi 0, %s23
    %s27 = sphi 0, %s26
    %s43 = sphi 0, %s27
    %s47 = sphi 0, %s47
    %s49 = sphi 0, %s47
    %s50 = sphi 0, %s49
    %s64 = sphi 0, %s50
    %s68 = sphi 0, %s68
    %s70 = sphi 0, %s68
    %s71 = sphi 0, %s70
    %s85 = sphi 0, %s71
    %s89 = sphi 0, %s89
    %s91 = sphi 0, %s89
    %s92 = sphi 0, %s91
    %s106 = sphi 0, %s92
    %s110 = sphi 0, %s110
    %s112 = sphi 0, %s110
    %s113 = sphi 0, %s112
    %s127 = sphi 0, %s113
    %s131 = sphi 0, %s131
    %s133 = sphi 0, %s131
    %s134 = sphi 0, %s133
    %s148 = sphi 0, %s134
    %s152 = sphi 0, %s152
    %s154 = sphi 0, %s152
    %s155 = sphi 0, %s154
    %s169 = sphi 0, %s155
    %s175 = sphi 0, %s177
    %s178 = sphi 0, %s175
    %s179 = sphi 0, %s178
    %s195 = sphi 0, %s179
  $region4: #{dan_forward.1} parent=0 // loop_header_branch
    %16 = sbr.rel (%p14) target = $region8
  $region5: #{dan_forward.1} parent=0 // loop_body
    %s18 = ssub.s32 %s13, 1
    %s19 = ssub.s32 %s13, 2
    %s20 = sadd.s32 %s13, 1
    %s21 = ssub.s32 %s13, %s20
    %p22 = scmp.eq.s32.totalorder %s21, 0
    %s24 = sadd.s32 %s23, 1
    %s25 = scalar_select %p22, %s23, %s24
    %p28 = pneg %p22
    %p29 = scmp.eq.s32.totalorder %s13, 1
    %p30 = por %p28, %p29
    %p31 = scmp.ne.s32.totalorder %s23, %s26
    %p32 = scmp.eq.s32.totalorder %s13, 0
    %p33 = por %p31, %p32
    %p34 = scmp.ne.s32.totalorder %s23, %s26
    %p35 = scmp.eq.s32.totalorder %s18, 1
    %p36 = por %p34, %p35
    %p37 = scmp.ne.s32.totalorder %s26, %s27
    %p38 = scmp.eq.s32.totalorder %s18, 0
    %p39 = por %p37, %p38
    %p40 = scmp.ne.s32.totalorder %s26, %s27
    %p41 = scmp.eq.s32.totalorder %s19, 1
    %p42 = por %p40, %p41
    %p44 = scmp.ne.s32.totalorder %s27, %s43
    %p45 = scmp.eq.s32.totalorder %s19, 0
    %p46 = por %p44, %p45
    %s48 = sadd.s32 %s47, 1
    %p51 = scmp.eq.s32.totalorder %s13, 1
    %p52 = scmp.ne.s32.totalorder %s47, %s49
    %p53 = scmp.eq.s32.totalorder %s13, 0
    %p54 = por %p52, %p53
    %p55 = scmp.ne.s32.totalorder %s47, %s49
    %p56 = scmp.eq.s32.totalorder %s18, 1
    %p57 = por %p55, %p56
    %p58 = scmp.ne.s32.totalorder %s49, %s50
    %p59 = scmp.eq.s32.totalorder %s18, 0
    %p60 = por %p58, %p59
    %p61 = scmp.ne.s32.totalorder %s49, %s50
    %p62 = scmp.eq.s32.totalorder %s19, 1
    %p63 = por %p61, %p62
    %p65 = scmp.ne.s32.totalorder %s50, %s64
    %p66 = scmp.eq.s32.totalorder %s19, 0
    %p67 = por %p65, %p66
    %s69 = sadd.s32 %s68, 1
    %p72 = scmp.eq.s32.totalorder %s13, 1
    %p73 = scmp.ne.s32.totalorder %s68, %s70
    %p74 = scmp.eq.s32.totalorder %s13, 0
    %p75 = por %p73, %p74
    %p76 = scmp.ne.s32.totalorder %s68, %s70
    %p77 = scmp.eq.s32.totalorder %s18, 1
    %p78 = por %p76, %p77
    %p79 = scmp.ne.s32.totalorder %s70, %s71
    %p80 = scmp.eq.s32.totalorder %s18, 0
    %p81 = por %p79, %p80
    %p82 = scmp.ne.s32.totalorder %s70, %s71
    %p83 = scmp.eq.s32.totalorder %s19, 1
    %p84 = por %p82, %p83
    %p86 = scmp.ne.s32.totalorder %s71, %s85
    %p87 = scmp.eq.s32.totalorder %s19, 0
    %p88 = por %p86, %p87
    %s90 = sadd.s32 %s89, 1
    %p93 = scmp.eq.s32.totalorder %s13, 1
    %p94 = scmp.ne.s32.totalorder %s89, %s91
    %p95 = scmp.eq.s32.totalorder %s13, 0
    %p96 = por %p94, %p95
    %p97 = scmp.ne.s32.totalorder %s89, %s91
    %p98 = scmp.eq.s32.totalorder %s18, 1
    %p99 = por %p97, %p98
    %p100 = scmp.ne.s32.totalorder %s91, %s92
    %p101 = scmp.eq.s32.totalorder %s18, 0
    %p102 = por %p100, %p101
    %p103 = scmp.ne.s32.totalorder %s91, %s92
    %p104 = scmp.eq.s32.totalorder %s19, 1
    %p105 = por %p103, %p104
    %p107 = scmp.ne.s32.totalorder %s92, %s106
    %p108 = scmp.eq.s32.totalorder %s19, 0
    %p109 = por %p107, %p108
    %s111 = sadd.s32 %s110, 1
    %p114 = scmp.eq.s32.totalorder %s13, 1
    %p115 = scmp.ne.s32.totalorder %s110, %s112
    %p116 = scmp.eq.s32.totalorder %s13, 0
    %p117 = por %p115, %p116
    %p118 = scmp.ne.s32.totalorder %s110, %s112
    %p119 = scmp.eq.s32.totalorder %s18, 1
    %p120 = por %p118, %p119
    %p121 = scmp.ne.s32.totalorder %s112, %s113
    %p122 = scmp.eq.s32.totalorder %s18, 0
    %p123 = por %p121, %p122
    %p124 = scmp.ne.s32.totalorder %s112, %s113
    %p125 = scmp.eq.s32.totalorder %s19, 1
    %p126 = por %p124, %p125
    %p128 = scmp.ne.s32.totalorder %s113, %s127
    %p129 = scmp.eq.s32.totalorder %s19, 0
    %p130 = por %p128, %p129
    %s132 = sadd.s32 %s131, 1
    %p135 = scmp.eq.s32.totalorder %s13, 1
    %p136 = scmp.ne.s32.totalorder %s131, %s133
    %p137 = scmp.eq.s32.totalorder %s13, 0
    %p138 = por %p136, %p137
    %p139 = scmp.ne.s32.totalorder %s131, %s133
    %p140 = scmp.eq.s32.totalorder %s18, 1
    %p141 = por %p139, %p140
    %p142 = scmp.ne.s32.totalorder %s133, %s134
    %p143 = scmp.eq.s32.totalorder %s18, 0
    %p144 = por %p142, %p143
    %p145 = scmp.ne.s32.totalorder %s133, %s134
    %p146 = scmp.eq.s32.totalorder %s19, 1
    %p147 = por %p145, %p146
    %p149 = scmp.ne.s32.totalorder %s134, %s148
    %p150 = scmp.eq.s32.totalorder %s19, 0
    %p151 = por %p149, %p150
    %s153 = sadd.s32 %s152, 1
    %p156 = scmp.eq.s32.totalorder %s13, 1
    %p157 = scmp.ne.s32.totalorder %s152, %s154
    %p158 = scmp.eq.s32.totalorder %s13, 0
    %p159 = por %p157, %p158
    %p160 = scmp.ne.s32.totalorder %s152, %s154
    %p161 = scmp.eq.s32.totalorder %s18, 1
    %p162 = por %p160, %p161
    %p163 = scmp.ne.s32.totalorder %s154, %s155
    %p164 = scmp.eq.s32.totalorder %s18, 0
    %p165 = por %p163, %p164
    %p166 = scmp.ne.s32.totalorder %s154, %s155
    %p167 = scmp.eq.s32.totalorder %s19, 1
    %p168 = por %p166, %p167
    %p170 = scmp.ne.s32.totalorder %s155, %s169
    %p171 = scmp.eq.s32.totalorder %s19, 0
    %p172 = por %p170, %p171
    %s173 = ssub.s32 %s13, %s20
    %p174 = scmp.eq.s32.totalorder %s173, 0
    %s176 = sadd.s32 %s175, 1
    %s177 = scalar_select %p174, %s175, %s176
    %p180 = pneg %p174
    %p181 = scmp.eq.s32.totalorder %s13, 1
    %p182 = por %p180, %p181
    %p183 = scmp.ne.s32.totalorder %s175, %s178
    %p184 = scmp.eq.s32.totalorder %s13, 0
    %p185 = por %p183, %p184
    %p186 = scmp.ne.s32.totalorder %s175, %s178
    %p187 = scmp.eq.s32.totalorder %s18, 1
    %p188 = por %p186, %p187
    %p189 = scmp.ne.s32.totalorder %s178, %s179
    %p190 = scmp.eq.s32.totalorder %s18, 0
    %p191 = por %p189, %p190
    %p192 = scmp.ne.s32.totalorder %s178, %s179
    %p193 = scmp.eq.s32.totalorder %s19, 1
    %p194 = por %p192, %p193
    %p196 = scmp.ne.s32.totalorder %s179, %s195
    %p197 = scmp.eq.s32.totalorder %s19, 0
    %p198 = por %p196, %p197
    %p199 = scmp.le.s32.totalorder 1, %s13
    %p200 = scmp.lt.s32.totalorder %s13, 3
    %p201 = pnand %p199, %p200
    %p202 = pneg %p201
    // Predicated region
    $region9: #{dan_forward.1} parent=5 // pred_check
      _
    $region10: #{dan_forward.1} parent=5 // pred_check_branch
      %204 = sbr.rel (%p201) target = $region12
    $region11: #{dan_forward.1} parent=5 // pred_region
      %s205 = ssub.s32 %s13, 1
      // Predicated region
      $region13: #{dan_forward.1} parent=11 // pred_check
        %p206 = pneg %p60
      $region14: #{dan_forward.1} parent=11 // pred_check_branch
        %208 = sbr.rel (%p206) target = $region16
      $region15: #{dan_forward.1} parent=11 // pred_region
        _
      $region16: #{dan_forward.1} parent=11 // pred_fallthru
        _
      // Predicated region
      $region17: #{dan_forward.1} parent=11 // pred_check
        %p209 = pneg %p81
      $region18: #{dan_forward.1} parent=11 // pred_check_branch
        %211 = sbr.rel (%p209) target = $region20
      $region19: #{dan_forward.1} parent=11 // pred_region
        _
      $region20: #{dan_forward.1} parent=11 // pred_fallthru
        _
      // Predicated region
      $region21: #{dan_forward.1} parent=11 // pred_check
        %p212 = pneg %p102
      $region22: #{dan_forward.1} parent=11 // pred_check_branch
        %214 = sbr.rel (%p212) target = $region24
      $region23: #{dan_forward.1} parent=11 // pred_region
        _
      $region24: #{dan_forward.1} parent=11 // pred_fallthru
        _
      // Predicated region
      $region25: #{dan_forward.1} parent=11 // pred_check
        %p215 = pneg %p123
      $region26: #{dan_forward.1} parent=11 // pred_check_branch
        %217 = sbr.rel (%p215) target = $region28
      $region27: #{dan_forward.1} parent=11 // pred_region
        _
      $region28: #{dan_forward.1} parent=11 // pred_fallthru
        _
      // Predicated region
      $region29: #{dan_forward.1} parent=11 // pred_check
        %p218 = pneg %p144
      $region30: #{dan_forward.1} parent=11 // pred_check_branch
        %220 = sbr.rel (%p218) target = $region32
      $region31: #{dan_forward.1} parent=11 // pred_region
        _
      $region32: #{dan_forward.1} parent=11 // pred_fallthru
        _
      // Predicated region
      $region33: #{dan_forward.1} parent=11 // pred_check
        %p221 = pneg %p165
      $region34: #{dan_forward.1} parent=11 // pred_check_branch
        %223 = sbr.rel (%p221) target = $region36
      $region35: #{dan_forward.1} parent=11 // pred_region
        _
      $region36: #{dan_forward.1} parent=11 // pred_fallthru
        _
    $region12: #{dan_forward.1} parent=5 // pred_fallthru
      _
    %p224 = scmp.lt.s32.totalorder %s13, 2
    // Predicated region
    $region37: #{dan_forward.1} parent=5 // pred_check
      %p225 = pneg %p224
    $region38: #{dan_forward.1} parent=5 // pred_check_branch
      %227 = sbr.rel (%p225) target = $region40
    $region39: #{dan_forward.1} parent=5 // pred_region
      // Predicated region
      $region41: #{dan_forward.1} parent=39 // pred_check
        %p228 = pneg %p33
      $region42: #{dan_forward.1} parent=39 // pred_check_branch
        %230 = sbr.rel (%p228) target = $region44
      $region43: #{dan_forward.1} parent=39 // pred_region
        %p231 = scmp.lt.s32.totalorder %s13, 1
        %s232 = scalar_select %p231, %s13, 1
        %s233 = smul.addr %s232, 4
        %s234 = scalar_lea.vmem %s0, %s233
      $region44: #{dan_forward.1} parent=39 // pred_fallthru
        _
    $region40: #{dan_forward.1} parent=5 // pred_fallthru
      _
    %p235 = scmp.le.s32.totalorder 1, %s13
    %p236 = scmp.lt.s32.totalorder %s13, 3
    %p237 = pnand %p235, %p236
    %p238 = pneg %p237
    // Predicated region
    $region45: #{dan_forward.1} parent=5 // pred_check
      _
    $region46: #{dan_forward.1} parent=5 // pred_check_branch
      %240 = sbr.rel (%p237) target = $region48
    $region47: #{dan_forward.1} parent=5 // pred_region
      %s241 = ssub.s32 %s13, 1
      %p242 = scmp.lt.s32.totalorder %s18, 1
      %s243 = scalar_select %p242, %s18, 1
      %s244 = smul.addr %s243, 4
      %s245 = scalar_lea.vmem %s0, %s244
      %p246 = pneg %p39
      %p247 = pneg %p36
      %p248 = pneg %p60
      %p249 = pneg %p57
      %p250 = pneg %p81
      %p251 = pneg %p78
      %p252 = pneg %p102
      %p253 = pneg %p99
      %p254 = pneg %p123
      %p255 = pneg %p120
      %p256 = pneg %p144
      %p257 = pneg %p141
      %p258 = pneg %p165
      %p259 = pneg %p162
      %p260 = pneg %p191
      %p261 = pneg %p188
      %p262 = scmp.lt.s32.totalorder %s18, 1
      %s263 = scalar_select %p262, %s18, 1
      %s264 = smul.addr %s263, 4
      %s265 = scalar_lea.vmem %s7, %s264
      %p266 = scmp.lt.s32.totalorder %s18, 1
      %s267 = scalar_select %p266, %s18, 1
      %s268 = smul.addr %s267, 4
      %s269 = scalar_lea.vmem %s0, %s268
      %p270 = scmp.lt.s32.totalorder %s18, 1
      %s271 = scalar_select %p270, %s18, 1
      %s272 = smul.addr %s271, 4
      %s273 = scalar_lea.vmem %s7, %s272
      %v275 = vld [vmem:[%s269] sm:$0xf]
      %v276 = vld [vmem:[%s1] sm:$0xf]
      %v277 = vld [vmem:[%s1 + $0x4] sm:$0xf]
      %v278 = vld [vmem:[%s1 + $0x8] sm:$0xf]
      %v279 = vld [vmem:[%s1 + $0xc] sm:$0xf]
      %v280 = vld [vmem:[%s1 + $0x10] sm:$0xf]
      %v281 = vld [vmem:[%s1 + $0x14] sm:$0xf]
      %v282 = vld [vmem:[%s1 + $0x18] sm:$0xf]
      %v283 = vld [vmem:[%s1 + $0x1c] sm:$0xf]
      %v284 = vld [vmem:[%s1 + $0x20] sm:$0xf]
      %v285 = vld [vmem:[%s1 + $0x24] sm:$0xf]
      %v286 = vld [vmem:[%s1 + $0x28] sm:$0xf]
      %v287 = vld [vmem:[%s1 + $0x2c] sm:$0xf]
      %v288 = vld [vmem:[%s1 + $0x30] sm:$0xf]
      %v289 = vld [vmem:[%s1 + $0x34] sm:$0xf]
      %v290 = vld [vmem:[%s1 + $0x38] sm:$0xf]
      %v291 = vld [vmem:[%s1 + $0x3c] sm:$0xf]
      %v292 = vld [vmem:[%s2] sm:$0x1]
      %v294 = vlaneseq
      %v295 = vshrl.u32 %v294, 7
      %v296 = vsub.s32 0, %v295
      %v297 = vrot.slane %v292, %v296
      %v315 = vunpack.c.l.b16 %v276
      %v316 = vunpack.c.l.b16 %v277
      %v317 = vunpack.c.l.b16 %v278
      %v318 = vunpack.c.l.b16 %v279
      %v319 = vunpack.c.l.b16 %v280
      %v320 = vunpack.c.l.b16 %v281
      %v321 = vunpack.c.l.b16 %v282
      %v322 = vunpack.c.l.b16 %v283
      %v323 = vunpack.c.l.b16 %v284
      %v324 = vunpack.c.l.b16 %v285
      %v325 = vunpack.c.l.b16 %v286
      %v326 = vunpack.c.l.b16 %v287
      %v327 = vunpack.c.l.b16 %v288
      %v328 = vunpack.c.l.b16 %v289
      %v329 = vunpack.c.l.b16 %v290
      %v330 = vunpack.c.l.b16 %v291
      %v331 = vpack.c.b16 %v316, %v315
      %v332 = vpack.c.b16 %v318, %v317
      %v333 = vpack.c.b16 %v320, %v319
      %v334 = vpack.c.b16 %v322, %v321
      %v335 = vpack.c.b16 %v324, %v323
      %v336 = vpack.c.b16 %v326, %v325
      %v337 = vpack.c.b16 %v328, %v327
      %v338 = vpack.c.b16 %v330, %v329
      %347 = vmatprep.subr.bf16.mxu0 0
      %348 = vmatpush1.bf16.msra.mxu0 %v331
      %349 = vmatprep.subr.bf16.mxu0 0
      %350 = vmatpush1.bf16.msra.mxu0 %v332
      %351 = vmatprep.subr.bf16.mxu0 0
      %352 = vmatpush1.bf16.msra.mxu0 %v333
      %353 = vmatprep.subr.bf16.mxu0 0
      %354 = vmatpush1.bf16.msra.mxu0 %v334
      %355 = vmatprep.subr.bf16.mxu0 0
      %356 = vmatpush1.bf16.msra.mxu0 %v335
      %357 = vmatprep.subr.bf16.mxu0 0
      %358 = vmatpush1.bf16.msra.mxu0 %v336
      %359 = vmatprep.subr.bf16.mxu0 0
      %360 = vmatpush1.bf16.msra.mxu0 %v337
      %361 = vmatprep.subr.bf16.mxu0 0
      %362 = vmatpush1.bf16.msra.mxu0 %v338
      %363 = vmatprep.subr.bf16.mxu0 0
      %364 = vmatpush1.bf16.msra.mxu0 0
      %365 = vmatprep.subr.bf16.mxu0 0
      %366 = vmatpush1.bf16.msra.mxu0 0
      %367 = vmatprep.subr.bf16.mxu0 0
      %368 = vmatpush1.bf16.msra.mxu0 0
      %369 = vmatprep.subr.bf16.mxu0 0
      %370 = vmatpush1.bf16.msra.mxu0 0
      %371 = vmatprep.subr.bf16.mxu0 0
      %372 = vmatpush1.bf16.msra.mxu0 0
      %373 = vmatprep.subr.bf16.mxu0 0
      %374 = vmatpush1.bf16.msra.mxu0 0
      %375 = vmatprep.subr.bf16.mxu0 0
      %376 = vmatpush1.bf16.msra.mxu0 0
      %377 = vmatprep.subr.bf16.mxu0 0
      %378 = vmatpush1.bf16.msra.mxu0 0
      %379 = vmatprep.mubr.bf16.mxu0 0
      %380 = vmatmul.mubr.bf16.gmra.mrb[0].mxu0 %v275
      %v381 = vpop.f32.mrb[0].mxu0
      %v382 = vadd.f32 %v297, %v381
      %v383 = vpop.f32.mrb[0].mxu0
      %v384 = vpop.f32.mrb[0].mxu0
      %v385 = vpop.f32.mrb[0].mxu0
      %386 = vdwg.mxu0
      %v387 = vmax.f32 %v382, 0.0
      %v388 = vpack.c.bf16 %v387, %v387
      %v389 = vld [vmem:[%s3] sm:$0xf]
      %v390 = vld [vmem:[%s3 + $0x4] sm:$0xf]
      %v391 = vld [vmem:[%s3 + $0x8] sm:$0xf]
      %v392 = vld [vmem:[%s3 + $0xc] sm:$0xf]
      %v393 = vld [vmem:[%s3 + $0x10] sm:$0xf]
      %v394 = vld [vmem:[%s3 + $0x14] sm:$0xf]
      %v395 = vld [vmem:[%s3 + $0x18] sm:$0xf]
      %v396 = vld [vmem:[%s3 + $0x1c] sm:$0xf]
      %v397 = vld [vmem:[%s3 + $0x20] sm:$0xf]
      %v398 = vld [vmem:[%s3 + $0x24] sm:$0xf]
      %v399 = vld [vmem:[%s3 + $0x28] sm:$0xf]
      %v400 = vld [vmem:[%s3 + $0x2c] sm:$0xf]
      %v401 = vld [vmem:[%s3 + $0x30] sm:$0xf]
      %v402 = vld [vmem:[%s3 + $0x34] sm:$0xf]
      %v403 = vld [vmem:[%s3 + $0x38] sm:$0xf]
      %v404 = vld [vmem:[%s3 + $0x3c] sm:$0xf]
      %v405 = vld [vmem:[%s4] sm:$0x1]
      %v407 = vlaneseq
      %v408 = vshrl.u32 %v407, 7
      %v409 = vsub.s32 0, %v408
      %v410 = vrot.slane %v405, %v409
      %v428 = vunpack.c.l.b16 %v389
      %v429 = vunpack.c.l.b16 %v390
      %v430 = vunpack.c.l.b16 %v391
      %v431 = vunpack.c.l.b16 %v392
      %v432 = vunpack.c.l.b16 %v393
      %v433 = vunpack.c.l.b16 %v394
      %v434 = vunpack.c.l.b16 %v395
      %v435 = vunpack.c.l.b16 %v396
      %v436 = vunpack.c.l.b16 %v397
      %v437 = vunpack.c.l.b16 %v398
      %v438 = vunpack.c.l.b16 %v399
      %v439 = vunpack.c.l.b16 %v400
      %v440 = vunpack.c.l.b16 %v401
      %v441 = vunpack.c.l.b16 %v402
      %v442 = vunpack.c.l.b16 %v403
      %v443 = vunpack.c.l.b16 %v404
      %v444 = vpack.c.b16 %v429, %v428
      %v445 = vpack.c.b16 %v431, %v430
      %v446 = vpack.c.b16 %v433, %v432
      %v447 = vpack.c.b16 %v435, %v434
      %v448 = vpack.c.b16 %v437, %v436
      %v449 = vpack.c.b16 %v439, %v438
      %v450 = vpack.c.b16 %v441, %v440
      %v451 = vpack.c.b16 %v443, %v442
      %460 = vmatprep.subr.bf16.mxu0 0
      %461 = vmatpush1.bf16.msra.mxu0 %v444
      %462 = vmatprep.subr.bf16.mxu0 0
      %463 = vmatpush1.bf16.msra.mxu0 %v445
      %464 = vmatprep.subr.bf16.mxu0 0
      %465 = vmatpush1.bf16.msra.mxu0 %v446
      %466 = vmatprep.subr.bf16.mxu0 0
      %467 = vmatpush1.bf16.msra.mxu0 %v447
      %468 = vmatprep.subr.bf16.mxu0 0
      %469 = vmatpush1.bf16.msra.mxu0 %v448
      %470 = vmatprep.subr.bf16.mxu0 0
      %471 = vmatpush1.bf16.msra.mxu0 %v449
      %472 = vmatprep.subr.bf16.mxu0 0
      %473 = vmatpush1.bf16.msra.mxu0 %v450
      %474 = vmatprep.subr.bf16.mxu0 0
      %475 = vmatpush1.bf16.msra.mxu0 %v451
      %476 = vmatprep.subr.bf16.mxu0 0
      %477 = vmatpush1.bf16.msra.mxu0 0
      %478 = vmatprep.subr.bf16.mxu0 0
      %479 = vmatpush1.bf16.msra.mxu0 0
      %480 = vmatprep.subr.bf16.mxu0 0
      %481 = vmatpush1.bf16.msra.mxu0 0
      %482 = vmatprep.subr.bf16.mxu0 0
      %483 = vmatpush1.bf16.msra.mxu0 0
      %484 = vmatprep.subr.bf16.mxu0 0
      %485 = vmatpush1.bf16.msra.mxu0 0
      %486 = vmatprep.subr.bf16.mxu0 0
      %487 = vmatpush1.bf16.msra.mxu0 0
      %488 = vmatprep.subr.bf16.mxu0 0
      %489 = vmatpush1.bf16.msra.mxu0 0
      %490 = vmatprep.subr.bf16.mxu0 0
      %491 = vmatpush1.bf16.msra.mxu0 0
      %492 = vmatprep.mubr.bf16.mxu0 0
      %493 = vmatmul.mubr.bf16.gmra.mrb[0].mxu0 %v388
      %v494 = vpop.f32.mrb[0].mxu0
      %v495 = vadd.f32 %v410, %v494
      %v496 = vpop.f32.mrb[0].mxu0
      %v497 = vpop.f32.mrb[0].mxu0
      %v498 = vpop.f32.mrb[0].mxu0
      %499 = vdwg.mxu0
      %v500 = vmax.f32 %v495, 0.0
      %v501 = vpack.c.bf16 %v500, %v500
      %v502 = vld [vmem:[%s5] sm:$0xf]
      %v503 = vld [vmem:[%s5 + $0x4] sm:$0xf]
      %v504 = vld [vmem:[%s5 + $0x8] sm:$0xf]
      %v505 = vld [vmem:[%s5 + $0xc] sm:$0xf]
      %v506 = vld [vmem:[%s5 + $0x10] sm:$0xf]
      %v507 = vld [vmem:[%s5 + $0x14] sm:$0xf]
      %v508 = vld [vmem:[%s5 + $0x18] sm:$0xf]
      %v509 = vld [vmem:[%s5 + $0x1c] sm:$0xf]
      %v510 = vld [vmem:[%s5 + $0x20] sm:$0xf]
      %v511 = vld [vmem:[%s5 + $0x24] sm:$0xf]
      %v512 = vld [vmem:[%s5 + $0x28] sm:$0xf]
      %v513 = vld [vmem:[%s5 + $0x2c] sm:$0xf]
      %v514 = vld [vmem:[%s5 + $0x30] sm:$0xf]
      %v515 = vld [vmem:[%s5 + $0x34] sm:$0xf]
      %v516 = vld [vmem:[%s5 + $0x38] sm:$0xf]
      %v517 = vld [vmem:[%s5 + $0x3c] sm:$0xf]
      %v518 = vld [vmem:[%s6] sm:$0x1]
      %v520 = vlaneseq
      %v521 = vshrl.u32 %v520, 7
      %v522 = vsub.s32 0, %v521
      %v523 = vrot.slane %v518, %v522
      %v541 = vunpack.c.l.b16 %v502
      %v542 = vunpack.c.l.b16 %v503
      %v543 = vunpack.c.l.b16 %v504
      %v544 = vunpack.c.l.b16 %v505
      %v545 = vunpack.c.l.b16 %v506
      %v546 = vunpack.c.l.b16 %v507
      %v547 = vunpack.c.l.b16 %v508
      %v548 = vunpack.c.l.b16 %v509
      %v549 = vunpack.c.l.b16 %v510
      %v550 = vunpack.c.l.b16 %v511
      %v551 = vunpack.c.l.b16 %v512
      %v552 = vunpack.c.l.b16 %v513
      %v553 = vunpack.c.l.b16 %v514
      %v554 = vunpack.c.l.b16 %v515
      %v555 = vunpack.c.l.b16 %v516
      %v556 = vunpack.c.l.b16 %v517
      %v557 = vpack.c.b16 %v542, %v541
      %v558 = vpack.c.b16 %v544, %v543
      %v559 = vpack.c.b16 %v546, %v545
      %v560 = vpack.c.b16 %v548, %v547
      %v561 = vpack.c.b16 %v550, %v549
      %v562 = vpack.c.b16 %v552, %v551
      %v563 = vpack.c.b16 %v554, %v553
      %v564 = vpack.c.b16 %v556, %v555
      %573 = vmatprep.subr.bf16.mxu0 0
      %574 = vmatpush1.bf16.msra.mxu0 %v557
      %575 = vmatprep.subr.bf16.mxu0 0
      %576 = vmatpush1.bf16.msra.mxu0 %v558
      %577 = vmatprep.subr.bf16.mxu0 0
      %578 = vmatpush1.bf16.msra.mxu0 %v559
      %579 = vmatprep.subr.bf16.mxu0 0
      %580 = vmatpush1.bf16.msra.mxu0 %v560
      %581 = vmatprep.subr.bf16.mxu0 0
      %582 = vmatpush1.bf16.msra.mxu0 %v561
      %583 = vmatprep.subr.bf16.mxu0 0
      %584 = vmatpush1.bf16.msra.mxu0 %v562
      %585 = vmatprep.subr.bf16.mxu0 0
      %586 = vmatpush1.bf16.msra.mxu0 %v563
      %587 = vmatprep.subr.bf16.mxu0 0
      %588 = vmatpush1.bf16.msra.mxu0 %v564
      %589 = vmatprep.subr.bf16.mxu0 0
      %590 = vmatpush1.bf16.msra.mxu0 0
      %591 = vmatprep.subr.bf16.mxu0 0
      %592 = vmatpush1.bf16.msra.mxu0 0
      %593 = vmatprep.subr.bf16.mxu0 0
      %594 = vmatpush1.bf16.msra.mxu0 0
      %595 = vmatprep.subr.bf16.mxu0 0
      %596 = vmatpush1.bf16.msra.mxu0 0
      %597 = vmatprep.subr.bf16.mxu0 0
      %598 = vmatpush1.bf16.msra.mxu0 0
      %599 = vmatprep.subr.bf16.mxu0 0
      %600 = vmatpush1.bf16.msra.mxu0 0
      %601 = vmatprep.subr.bf16.mxu0 0
      %602 = vmatpush1.bf16.msra.mxu0 0
      %603 = vmatprep.subr.bf16.mxu0 0
      %604 = vmatpush1.bf16.msra.mxu0 0
      %605 = vmatprep.mubr.bf16.mxu0 0
      %606 = vmatmul.mubr.bf16.gmra.mrb[0].mxu0 %v501
      %v607 = vpop.f32.mrb[0].mxu0
      %v608 = vadd.f32 %v523, %v607
      %v609 = vpop.f32.mrb[0].mxu0
      %v610 = vpop.f32.mrb[0].mxu0
      %v611 = vpop.f32.mrb[0].mxu0
      %612 = vdwg.mxu0
      %v613 = vpack.c.bf16 %v608, %v608
      %614 = vst [vmem:[%s273] sm:$0xf] %v613
      %p615 = scmp.lt.s32.totalorder %s18, 1
      %s616 = scalar_select %p615, %s18, 1
      %s617 = smul.addr %s616, 4
      %s618 = scalar_lea.vmem %s7, %s617
      // Predicated region
      $region49: #{dan_forward.1} parent=47 // pred_check
        %p619 = pneg %p188
      $region50: #{dan_forward.1} parent=47 // pred_check_branch
        %621 = sbr.rel (%p619) target = $region52
      $region51: #{dan_forward.1} parent=47 // pred_region
        _
      $region52: #{dan_forward.1} parent=47 // pred_fallthru
        _
    $region48: #{dan_forward.1} parent=5 // pred_fallthru
      _
    %p622 = scmp.le.s32.totalorder 2, %s13
    // Predicated region
    $region53: #{dan_forward.1} parent=5 // pred_check
      %p623 = pneg %p622
    $region54: #{dan_forward.1} parent=5 // pred_check_branch
      %625 = sbr.rel (%p623) target = $region56
    $region55: #{dan_forward.1} parent=5 // pred_region
      %s626 = ssub.s32 %s13, 2
      // Predicated region
      $region57: #{dan_forward.1} parent=55 // pred_check
        %p627 = pneg %p194
      $region58: #{dan_forward.1} parent=55 // pred_check_branch
        %629 = sbr.rel (%p627) target = $region60
      $region59: #{dan_forward.1} parent=55 // pred_region
        %p630 = scmp.lt.s32.totalorder %s19, 1
        %s631 = scalar_select %p630, %s19, 1
        %s632 = smul.addr %s631, 4
        %s633 = scalar_lea.vmem %s7, %s632
      $region60: #{dan_forward.1} parent=55 // pred_fallthru
        _
    $region56: #{dan_forward.1} parent=5 // pred_fallthru
      _
  $region6: #{dan_forward.1} parent=0 // loop_footer
    %s17 = sadd.s32 1, %s13
  $region7: #{dan_forward.1} parent=0 // loop_footer_branch
    %12 = sbr.rel target = $region3
  $region8: #{dan_forward.1} parent=0 // loop_exit
    _

</llo_original>
